<compile_context>
chip_gen: v6e
topology: v6e:2x2x1
jax: 0.10.0
libtpu: 0.0.40
codegen_flags: <defaults>
</compile_context>

<pallas_src>
import time

import jax
import jax.numpy as jnp
from jax.experimental import pallas as pl
from jax.experimental.pallas import tpu as pltpu


def _round_up(x, m):
    return ((x + m - 1) // m) * m


def _cdiv(a, b):
    return (a + b - 1) // b


def _largest_divisor_tile(dim, cap, gran):
    """Largest multiple of `gran` that divides `dim` and is <= cap.

    `dim` is assumed to already be a multiple of `gran` (lane/sublane aligned),
    so `gran` itself is always a valid fallback.
    """
    t = max((min(dim, cap) // gran) * gran, gran)
    while t > gran and dim % t != 0:
        t -= gran
    return t


def _vmem_budget_bytes():
    """Generation-aware scoped-VMEM budget.

    ~48 MiB on v7x (64 MiB physical per TC), ~96 MiB on v5e/v6e (128 MiB).
    Falls back to the conservative v7x-class figure if the query fails.
    """
    try:
        cap = int(pltpu.get_tpu_info().vmem_capacity_bytes)
    except Exception:
        cap = 64 << 20
    return int(min(cap * 3 // 4, 100 << 20))


def _linear_kernel_out_acc(x_ref, w_ref, b_ref, o_ref):
    """One (tm, tn) tile of y = x @ w + b, accumulated directly in o_ref (f32).

    Grid = (M//tm, N//tn, K//tk); K is the innermost (reduction) axis and the
    output BlockSpec maps to the same (i, j) block for every k, so o_ref stays
    VMEM-resident across the whole K loop (no scratch, no final copy).
    """
    k = pl.program_id(2)

    @pl.when(k == 0)
    def _():
        # Initialize with the broadcast bias: added exactly once per tile.
        o_ref[...] = jnp.zeros_like(o_ref) + b_ref[...]

    o_ref[...] += jnp.dot(
        x_ref[...].astype(w_ref.dtype), w_ref[...],
        preferred_element_type=jnp.float32,
    )


def _linear_kernel_scratch_acc(x_ref, w_ref, b_ref, o_ref, acc_ref):
    """Same as above, but with an f32 VMEM accumulator and a downcast epilogue
    on the last K step (used when the requested output dtype is not f32)."""
    k = pl.program_id(2)

    @pl.when(k == 0)
    def _():
        acc_ref[...] = jnp.zeros_like(acc_ref) + b_ref[...]

    acc_ref[...] += jnp.dot(
        x_ref[...].astype(w_ref.dtype), w_ref[...],
        preferred_element_type=jnp.float32,
    )

    @pl.when(k == pl.num_programs(2) - 1)
    def _():
        o_ref[...] = acc_ref[...].astype(o_ref.dtype)


def pallas_linear(x, w, b, *, out_dtype=None, n_out=None):
    """y = x @ w + b as a tiled Pallas TPU kernel.

    x: (M, K)      activations (any float dtype; cast to w.dtype for the MXU)
    w: (Kw, Nw)    weights in the MXU compute dtype.  Kw/Nw may already be
                   padded to 128-multiples by the caller (hoisted glue); the
                   zero-padded K columns of x guarantee correctness either way.
    b: (Nw,) or (1, Nw) bias
    n_out:         logical output width (<= Nw) to slice back to.
    """
    M, K = x.shape
    Kw, Nw = w.shape
    assert Kw >= K, (Kw, K)
    b2d = jnp.asarray(b).reshape(1, -1)
    assert b2d.shape[1] == Nw, (b2d.shape, Nw)
    if out_dtype is None:
        out_dtype = x.dtype
    n_keep = Nw if n_out is None else int(n_out)

    compute_dtype = w.dtype
    use_scratch = jnp.dtype(out_dtype) != jnp.dtype(jnp.float32)
    sub = 16 if (jnp.dtype(compute_dtype).itemsize == 2
                 or jnp.dtype(out_dtype).itemsize == 2) else 8

    Mr = _round_up(M, sub)
    Nr = _round_up(Nw, 128)
    Kr = _round_up(Kw, 128)

    # ---- tile selection -----------------------------------------------------
    # Lane-dense tiles; tn/tk constrained to 128-multiple divisors of the
    # (128-aligned) N/K so the (possibly pre-padded) weight never needs a
    # per-call re-pad and no padded compute is added along N or K.
    tm = min(Mr, 512)
    tn = _largest_divisor_tile(Nr, 512, 128)
    tk = _largest_divisor_tile(Kr, 2048, 128)

    # v7x has two TensorCores: make sure the "parallel" (i, j) part of the grid
    # has at least 2 tiles whenever the shape allows, else one core idles.
    if _cdiv(M, tm) * (Nr // tn) < 2:
        tm_half = _round_up(_cdiv(Mr, 2), sub)
        if tm_half < Mr:
            tm = tm_half
        elif tn >= 256:
            tn = _largest_divisor_tile(Nr, tn // 2, 128)

    # Pre-cast x only when it is re-streamed for several N tiles; otherwise
    # stream it once in its original dtype and cast inside the kernel (a VPU op
    # hidden under the MXU), avoiding an extra full HBM pass over x.
    precast = (Nr // tn) >= 2 and x.dtype != compute_dtype

    # ---- generation-aware VMEM budget ---------------------------------------
    budget = _vmem_budget_bytes()
    x_bytes = (jnp.dtype(compute_dtype).itemsize if precast
               else jnp.dtype(x.dtype).itemsize)
    w_bytes = jnp.dtype(compute_dtype).itemsize
    o_bytes = jnp.dtype(out_dtype).itemsize

    def _footprint(tk_):
        f = (2 * tm * tk_ * x_bytes        # double-buffered x tiles
             + 2 * tk_ * tn * w_bytes      # double-buffered W tiles
             + 2 * tm * tn * o_bytes       # output tiles
             + 2 * tn * 4)                 # bias tile
        if use_scratch:
            f += tm * tn * 4               # f32 accumulator scratch
        return f

    while tk > 128 and _footprint(tk) > (4 * budget) // 5:
        tk = _largest_divisor_tile(Kr, tk - 128, 128)

    Mp = _round_up(M, tm)
    grid = (Mp // tm, Nr // tn, Kr // tk)

    # ---- wrapper glue (fused under jit) --------------------------------------
    # Single cast+pad pass over x; weights/bias are only padded here if the
    # caller did not already pre-pad them (hoisted to init in the child).
    x_in = x.astype(compute_dtype) if precast else x
    if (Mp, Kr) != (M, K):
        x_in = jnp.pad(x_in, ((0, Mp - M), (0, Kr - K)))
    if (Kr, Nr) != (Kw, Nw):
        w = jnp.pad(w, ((0, Kr - Kw), (0, Nr - Nw)))
    b2d = b2d.astype(jnp.float32)
    if Nr != b2d.shape[1]:
        b2d = jnp.pad(b2d, ((0, 0), (0, Nr - b2d.shape[1])))

    if use_scratch:
        kernel = _linear_kernel_scratch_acc
        scratch_shapes = [pltpu.VMEM((tm, tn), jnp.float32)]
    else:
        kernel = _linear_kernel_out_acc
        scratch_shapes = []

    yp = pl.pallas_call(
        kernel,
        out_shape=jax.ShapeDtypeStruct((Mp, Nr), out_dtype),
        grid_spec=pltpu.PrefetchScalarGridSpec(
            num_scalar_prefetch=0,
            grid=grid,
            in_specs=[
                pl.BlockSpec((tm, tk), lambda i, j, k: (i, k)),   # x tile
                pl.BlockSpec((tk, tn), lambda i, j, k: (k, j)),   # W tile
                pl.BlockSpec((1, tn), lambda i, j, k: (0, j)),    # bias tile
            ],
            out_specs=pl.BlockSpec((tm, tn), lambda i, j, k: (i, j)),
            scratch_shapes=scratch_shapes,
        ),
        compiler_params=pltpu.CompilerParams(
            dimension_semantics=("parallel", "parallel", "arbitrary"),
            vmem_limit_bytes=int(budget),
        ),
    )(x_in, w, b2d)

    if (Mp, Nr) != (M, n_keep):
        yp = yp[:M, :n_keep]
    return yp


class PallasLinearChild:
    """Deterministically-initialized stand-in for nn.Linear(hidden, hidden).

    All one-time glue (transpose to [in, out], bf16 cast, K/N padding to lane
    multiples, bias reshape/cast) is hoisted here so the per-call hot path only
    contains the fused x pad/cast and the Pallas kernel.
    """

    def __init__(self, hidden, key):
        kw, kb = jax.random.split(key)
        # PyTorch nn.Linear layout is [out, in]; transpose once here (glue).
        w_out_in = jax.random.normal(kw, (hidden, hidden), jnp.float32) * 0.02
        w = jnp.transpose(w_out_in).astype(jnp.bfloat16)            # [in, out]
        b = jax.random.normal(kb, (hidden,), jnp.float32) * 0.02
        kp = _round_up(hidden, 128)
        np_ = _round_up(hidden, 128)
        # Padded K rows of W multiply zero-padded x columns (no effect on the
        # result); padded N columns are sliced off after the kernel.
        self.w = jnp.pad(w, ((0, kp - hidden), (0, np_ - hidden)))
        self.b = jnp.pad(b, (0, np_ - hidden)).reshape(1, np_)
        self.hidden = hidden
        self._fn = jax.jit(pallas_linear, static_argnames=("out_dtype", "n_out"))

    def __call__(self, x):
        return self._fn(x, self.w, self.b, n_out=self.hidden)


class TimedModule:
    """JAX port of the PyTorch TimedModule wrapper.

    forward: x -> child(x); records elapsed wall time (ms) per call.
    # TODO(synk): torch.cuda.Event has no Pallas/TPU equivalent; timing is
    # reproduced host-side via jax.block_until_ready + perf_counter.  At tiny
    # shapes this measures dispatch/sync, not the kernel itself.
    """

    def __init__(self, child, idx=0):
        self.child = child
        self.latencies = []
        self.idx = idx

    def __call__(self, x):
        t0 = time.perf_counter()            # ~ self.start.record()
        y = self.child(x)                   # x = self.child(x)
        jax.block_until_ready(y)            # ~ self.end.record(); synchronize()
        t1 = time.perf_counter()
        self.latencies.append((t1 - t0) * 1e3)  # elapsed_time() is ms
        return y

    def get_latencies(self):
        return self.latencies[:]


if __name__ == "__main__":
    key = jax.random.PRNGKey(0)
    (k_x, k_child, k_x2, k_w2, k_b2, k_x4, k_w4, k_b4) = jax.random.split(key, 8)

    # --- small demo shape consistent with the module (batch=8, hidden=32) ----
    batch, hidden = 8, 32
    x = jax.random.normal(k_x, (batch, hidden), jnp.float32)

    child = PallasLinearChild(hidden, k_child)
    timed = TimedModule(child, idx=0)

    y = timed(x)
    jax.block_until_ready(y)

    w_log = child.w[:hidden, :hidden]
    b_log = child.b[0, :hidden]
    y_ref = jnp.dot(x.astype(w_log.dtype), w_log,
                    preferred_element_type=jnp.float32) + b_log
    assert y.shape == (batch, hidden)
    assert y.dtype == jnp.float32
    assert jnp.allclose(y, y_ref, atol=1e-4, rtol=1e-4), float(
        jnp.max(jnp.abs(y - y_ref)))
    assert len(timed.get_latencies()) == 1

    # --- multi-tile M grid (2-TC split), M padding, kernel-side cast,
    #     f32 direct-accumulate ------------------------------------------------
    M2, K2, N2 = 300, 640, 384
    x2 = jax.random.normal(k_x2, (M2, K2), jnp.float32)
    w2 = (jax.random.normal(k_w2, (K2, N2), jnp.float32) * 0.02).astype(jnp.bfloat16)
    b2 = jax.random.normal(k_b2, (N2,), jnp.float32) * 0.02
    y2 = pallas_linear(x2, w2, b2)
    jax.block_until_ready(y2)
    y2_ref = jnp.dot(x2.astype(jnp.bfloat16), w2,
                     preferred_element_type=jnp.float32) + b2
    assert y2.shape == (M2, N2)
    assert jnp.allclose(y2, y2_ref, atol=1e-4, rtol=1e-3), float(
        jnp.max(jnp.abs(y2 - y2_ref)))

    # --- bf16 output path (scratch accumulator + downcast epilogue) ----------
    y3 = pallas_linear(x2, w2, b2, out_dtype=jnp.bfloat16)
    jax.block_until_ready(y3)
    assert y3.dtype == jnp.bfloat16
    assert jnp.allclose(y3.astype(jnp.float32), y2_ref, atol=3e-2, rtol=3e-2)

    # --- multi-K accumulation + pre-cast path (x re-streamed for 2 N tiles) --
    M4, K4, N4 = 256, 2304, 1024
    x4 = jax.random.normal(k_x4, (M4, K4), jnp.float32)
    w4 = (jax.random.normal(k_w4, (K4, N4), jnp.float32) * 0.02).astype(jnp.bfloat16)
    b4 = jax.random.normal(k_b4, (N4,), jnp.float32) * 0.02
    y4 = pallas_linear(x4, w4, b4)
    jax.block_until_ready(y4)
    y4_ref = jnp.dot(x4.astype(jnp.bfloat16), w4,
                     preferred_element_type=jnp.float32) + b4
    assert y4.shape == (M4, N4)
    assert jnp.allclose(y4, y4_ref, atol=2e-4, rtol=2e-3), float(
        jnp.max(jnp.abs(y4 - y4_ref)))

    print("KERNEL_OK")
</pallas_src>

<mosaic_0001>
module attributes {stable_mosaic.version = 11 : i64} {
  func.func @_linear_kernel_out_acc(%arg0: i32, %arg1: i32, %arg2: i32, %arg3: memref<16x128xf32, #tpu.memory_space<vmem>>, %arg4: memref<128x128xbf16, #tpu.memory_space<vmem>>, %arg5: memref<1x128xf32, #tpu.memory_space<vmem>>, %arg6: memref<16x128xf32, #tpu.memory_space<vmem>>) attributes {dimension_semantics = [#tpu.dimension_semantics<parallel>, #tpu.dimension_semantics<parallel>, #tpu.dimension_semantics<arbitrary>], iteration_bounds = array<i64: 1, 1, 1>, scalar_prefetch = 0 : i64, scratch_operands = 0 : i64, tpu.core_type = #tpu.core_type<tc>, window_params = [{transform_indices = @transform_0, window_bounds = array<i64: 16, 128>}, {transform_indices = @transform_1, window_bounds = array<i64: 128, 128>}, {transform_indices = @transform_2, window_bounds = array<i64: 1, 128>}, {transform_indices = @transform_3, window_bounds = array<i64: 16, 128>}]} {
    %c0_i32 = arith.constant 0 : i32
    %0 = arith.cmpi eq, %arg2, %c0_i32 : i32
    %1 = arith.extui %0 : i1 to i32
    %c0_i32_0 = arith.constant 0 : i32
    %2 = arith.cmpi ne, %1, %c0_i32_0 : i32
    scf.if %2 {
      %cst_8 = arith.constant 0.000000e+00 : f32
      %10 = vector.broadcast %cst_8 : f32 to vector<16x128xf32>
      %c0_9 = arith.constant 0 : index
      %c0_10 = arith.constant 0 : index
      %11 = vector.load %arg5[%c0_9, %c0_10] : memref<1x128xf32, #tpu.memory_space<vmem>>, vector<1x128xf32>
      %12 = vector.broadcast %11 : vector<1x128xf32> to vector<16x128xf32>
      %13 = arith.addf %10, %12 : vector<16x128xf32>
      %c0_11 = arith.constant 0 : index
      %c0_12 = arith.constant 0 : index
      %14 = vector.load %arg6[%c0_11, %c0_12] : memref<16x128xf32, #tpu.memory_space<vmem>>, vector<16x128xf32>
      tpu.vector_store %arg6[%c0_11, %c0_12], %13 {strides = array<i32>} : memref<16x128xf32, #tpu.memory_space<vmem>>, vector<16x128xf32>,
    } else {
    }
    %c0 = arith.constant 0 : index
    %c0_1 = arith.constant 0 : index
    %3 = vector.load %arg6[%c0, %c0_1] : memref<16x128xf32, #tpu.memory_space<vmem>>, vector<16x128xf32>
    %c0_2 = arith.constant 0 : index
    %c0_3 = arith.constant 0 : index
    %4 = vector.load %arg3[%c0_2, %c0_3] : memref<16x128xf32, #tpu.memory_space<vmem>>, vector<16x128xf32>
    %5 = arith.truncf %4 : vector<16x128xf32> to vector<16x128xbf16>
    %c0_4 = arith.constant 0 : index
    %c0_5 = arith.constant 0 : index
    %6 = vector.load %arg4[%c0_4, %c0_5] : memref<128x128xbf16, #tpu.memory_space<vmem>>, vector<128x128xbf16>
    %cst = arith.constant dense<0.000000e+00> : vector<16x128xf32>
    %7 = tpu.matmul %5, %6, %cst {dimension_numbers = #tpu.dot_dimension_numbers<[1], [0], [0], [1], [0, 0, 1, 1], [], []>} : vector<16x128xbf16>, vector<128x128xbf16>, vector<16x128xf32> -> vector<16x128xf32>
    %8 = arith.addf %3, %7 : vector<16x128xf32>
    %c0_6 = arith.constant 0 : index
    %c0_7 = arith.constant 0 : index
    %9 = vector.load %arg6[%c0_6, %c0_7] : memref<16x128xf32, #tpu.memory_space<vmem>>, vector<16x128xf32>
    tpu.vector_store %arg6[%c0_6, %c0_7], %8 {strides = array<i32>} : memref<16x128xf32, #tpu.memory_space<vmem>>, vector<16x128xf32>,
    return
  }
  func.func @transform_0(%arg0: i32, %arg1: i32, %arg2: i32) -> (i32, i32) {
    %c0_i32 = arith.constant 0 : i32
    return %arg0, %arg2 : i32, i32
  }
  func.func @transform_1(%arg0: i32, %arg1: i32, %arg2: i32) -> (i32, i32) {
    %c0_i32 = arith.constant 0 : i32
    return %arg2, %arg1 : i32, i32
  }
  func.func @transform_2(%arg0: i32, %arg1: i32, %arg2: i32) -> (i32, i32) {
    %c0_i32 = arith.constant 0 : i32
    %c0_i32_0 = arith.constant 0 : i32
    return %c0_i32, %arg1 : i32, i32
  }
  func.func @transform_3(%arg0: i32, %arg1: i32, %arg2: i32) -> (i32, i32) {
    %c0_i32 = arith.constant 0 : i32
    return %arg0, %arg1 : i32, i32
  }
}

</mosaic_0001>

<llo_original>
// kernel: pallas_linear.1
$region0: #{pallas_linear.1}
  #allocation0 [shape = 'u32[]', space=smem, size = 0x4, offset = 0x4, fixed_abs, tag = 'smem constant byte address 0x4 - core index']
  #allocation1 [shape = 'u32[144,128]{1,0:T(1,128)}', space=vmem, size = 0x12000, scoped, tag = 'internal scratch']
  %s0 = inlined_call_operand.vmem [shape: f32[16,128], index: 0, kind: input, shape index: {}]
  %s1 = inlined_call_operand.hbm [shape: bf16[128,128], index: 1, kind: input, shape index: {}]
  %s2 = inlined_call_operand.vmem [shape: f32[1,128], index: 2, kind: input, shape index: {}]
  %s3 = inlined_call_operand.vmem [shape: f32[16,128], index: 3, kind: output, shape index: {}]
  %s4 = sld [smem:[#allocation0]]
  $region30: #{pallas_linear.1} parent=0
    _
  %s6 = ssub.s32 1, %s4
  %s7 = scalar_select 0, %s6, %s4
  $region1: #{pallas_linear.1} parent=0
    #allocation2 [shape = 'u8[32768]{0}', space=vmem, size = 0x8000, scoped, tag = 'input window, operand 1, single buffered']
    #allocation3 [shape = 's32[1]{0}', space=sflag, size = 0x4, scoped, tag = 'scoped memory for pallas_linear.1']
    %8 = vsyncpa [#allocation3], 0
    // Predicated region
    $region2: #{pallas_linear.1} parent=1 // pred_check
      _
    $region3: #{pallas_linear.1} parent=1 // pred_check_branch
      %10 = sbr.rel (0) target = $region5
    $region4: #{pallas_linear.1} parent=1 // pred_region
      _
    $region5: #{pallas_linear.1} parent=1 // pred_fallthru
      _
    // Predicated region
    $region6: #{pallas_linear.1} parent=1 // pred_check
      _
    $region7: #{pallas_linear.1} parent=1 // pred_check_branch
      %12 = sbr.rel (0) target = $region9
    $region8: #{pallas_linear.1} parent=1 // pred_region
      %s14 = ssub.s32 1024, 1024
      %15 = vsyncadd [#allocation3], %s14
      %s16 = sshll.u32 [#allocation2], 4
      %s17 = int_to_ptr.vmem [resolvable:$true] %s16
      %22 = dma.hbm_to_vmem [thread:$0]  %s1, 1024, %s17, [#allocation3], 64, 64, 4
    $region9: #{pallas_linear.1} parent=1 // pred_fallthru
      _
    // Predicated region
    $region10: #{pallas_linear.1} parent=1 // pred_check
      _
    $region11: #{pallas_linear.1} parent=1 // pred_check_branch
      %24 = sbr.rel (0) target = $region13
    $region12: #{pallas_linear.1} parent=1 // pred_region
      _
    $region13: #{pallas_linear.1} parent=1 // pred_fallthru
      _
    // Predicated region
    $region14: #{pallas_linear.1} parent=1 // pred_check
      _
    $region15: #{pallas_linear.1} parent=1 // pred_check_branch
      %26 = sbr.rel (0) target = $region17
    $region16: #{pallas_linear.1} parent=1 // pred_region
      %27 = dma.done [#allocation3], 1024
    $region17: #{pallas_linear.1} parent=1 // pred_fallthru
      _
    %p29 = scmp.eq.s32.totalorder 0, 0
    // Predicated region
    $region18: #{pallas_linear.1} parent=1 // pred_check
      %p30 = pneg %p29
    $region19: #{pallas_linear.1} parent=1 // pred_check_branch
      %32 = sbr.rel (%p30) target = $region21
    $region20: #{pallas_linear.1} parent=1 // pred_region
      %v33 = vld [vmem:[%s2] sm:$0x1]
      %v35 = vlaneseq
      %v36 = vshrl.u32 %v35, 7
      %v37 = vsub.s32 0, %v36
      %v38 = vrot.slane %v33, %v37
      %v40 = vadd.f32 %v38, 0.0
      %41 = vst [vmem:[%s3] sm:$0xff] %v40
      %42 = vst [vmem:[%s3 + $0x8] sm:$0xff] %v40
    $region21: #{pallas_linear.1} parent=1 // pred_fallthru
      _
    %v43 = vld [vmem:[%s3] sm:$0xff]
    %v44 = vld [vmem:[%s3 + $0x8] sm:$0xff]
    %v45 = vld [vmem:[%s0] sm:$0xff]
    %v46 = vld [vmem:[%s0 + $0x8] sm:$0xff]
    %v47 = vpack.c.bf16 %v46, %v45
    %v48 = vld [vmem:[#allocation2] sm:$0xf]
    %v49 = vld [vmem:[#allocation2 + $0x4] sm:$0xf]
    %v50 = vld [vmem:[#allocation2 + $0x8] sm:$0xf]
    %v51 = vld [vmem:[#allocation2 + $0xc] sm:$0xf]
    %v52 = vld [vmem:[#allocation2 + $0x10] sm:$0xf]
    %v53 = vld [vmem:[#allocation2 + $0x14] sm:$0xf]
    %v54 = vld [vmem:[#allocation2 + $0x18] sm:$0xf]
    %v55 = vld [vmem:[#allocation2 + $0x1c] sm:$0xf]
    %v56 = vld [vmem:[#allocation2 + $0x20] sm:$0xf]
    %v57 = vld [vmem:[#allocation2 + $0x24] sm:$0xf]
    %v58 = vld [vmem:[#allocation2 + $0x28] sm:$0xf]
    %v59 = vld [vmem:[#allocation2 + $0x2c] sm:$0xf]
    %v60 = vld [vmem:[#allocation2 + $0x30] sm:$0xf]
    %v61 = vld [vmem:[#allocation2 + $0x34] sm:$0xf]
    %v62 = vld [vmem:[#allocation2 + $0x38] sm:$0xf]
    %v63 = vld [vmem:[#allocation2 + $0x3c] sm:$0xf]
    %v80 = vunpack.c.l.b16 %v48
    %v81 = vunpack.c.l.b16 %v49
    %v82 = vunpack.c.l.b16 %v50
    %v83 = vunpack.c.l.b16 %v51
    %v84 = vunpack.c.l.b16 %v52
    %v85 = vunpack.c.l.b16 %v53
    %v86 = vunpack.c.l.b16 %v54
    %v87 = vunpack.c.l.b16 %v55
    %v88 = vunpack.c.l.b16 %v56
    %v89 = vunpack.c.l.b16 %v57
    %v90 = vunpack.c.l.b16 %v58
    %v91 = vunpack.c.l.b16 %v59
    %v92 = vunpack.c.l.b16 %v60
    %v93 = vunpack.c.l.b16 %v61
    %v94 = vunpack.c.l.b16 %v62
    %v95 = vunpack.c.l.b16 %v63
    %v96 = vpack.c.b16 %v81, %v80
    %v97 = vpack.c.b16 %v83, %v82
    %v98 = vpack.c.b16 %v85, %v84
    %v99 = vpack.c.b16 %v87, %v86
    %v100 = vpack.c.b16 %v89, %v88
    %v101 = vpack.c.b16 %v91, %v90
    %v102 = vpack.c.b16 %v93, %v92
    %v103 = vpack.c.b16 %v95, %v94
    %112 = vmatprep.subr.bf16.mxu0 0
    %113 = vmatpush1.bf16.msra.mxu0 %v103
    %114 = vmatprep.subr.bf16.mxu0 0
    %115 = vmatpush1.bf16.msra.mxu0 %v102
    %116 = vmatprep.subr.bf16.mxu0 0
    %117 = vmatpush1.bf16.msra.mxu0 %v101
    %118 = vmatprep.subr.bf16.mxu0 0
    %119 = vmatpush1.bf16.msra.mxu0 %v100
    %120 = vmatprep.subr.bf16.mxu0 0
    %121 = vmatpush1.bf16.msra.mxu0 %v99
    %122 = vmatprep.subr.bf16.mxu0 0
    %123 = vmatpush1.bf16.msra.mxu0 %v98
    %124 = vmatprep.subr.bf16.mxu0 0
    %125 = vmatpush1.bf16.msra.mxu0 %v97
    %126 = vmatprep.subr.bf16.mxu0 0
    %127 = vmatpush1.bf16.msra.mxu0 %v96
    %128 = vmatprep.subr.bf16.mxu0 0
    %129 = vmatpush2.bf16.msra.mxu0 0
    %130 = vmatprep.subr.bf16.mxu0 0
    %131 = vmatpush2.bf16.msra.mxu0 0
    %132 = vmatprep.subr.bf16.mxu0 0
    %133 = vmatpush2.bf16.msra.mxu0 0
    %134 = vmatprep.subr.bf16.mxu0 0
    %135 = vmatpush2.bf16.msra.mxu0 0
    %136 = vmatprep.subr.bf16.mxu0 0
    %137 = vmatpush2.bf16.msra.mxu0 0
    %138 = vmatprep.subr.bf16.mxu0 0
    %139 = vmatpush2.bf16.msra.mxu0 0
    %140 = vmatprep.subr.bf16.mxu0 0
    %141 = vmatpush2.bf16.msra.mxu0 0
    %142 = vmatprep.subr.bf16.mxu0 0
    %143 = vmatpush2.bf16.msra.mxu0 0
    %144 = vmatprep.mubr.bf16.mxu0 0
    %145 = vmatmul.mubr.bf16.gmra.mxu0 %v47
    %v146 = vpop.f32.mrf.mxu0
    %v147 = vadd.f32 0.0, %v146
    %v148 = vpop.f32.mrf.mxu0
    %v149 = vpop.f32.mrf.mxu0
    %v150 = vadd.f32 0.0, %v149
    %v151 = vpop.f32.mrf.mxu0
    %152 = vdwg.mxu0
    %v153 = vadd.f32 %v43, %v147
    %v154 = vadd.f32 %v44, %v150
    %155 = vst [vmem:[%s3] sm:$0xff] %v153
    %156 = vst [vmem:[%s3 + $0x8] sm:$0xff] %v154
    // Predicated region
    $region22: #{pallas_linear.1} parent=1 // pred_check
      _
    $region23: #{pallas_linear.1} parent=1 // pred_check_branch
      %158 = sbr.rel (0) target = $region25
    $region24: #{pallas_linear.1} parent=1 // pred_region
      _
    $region25: #{pallas_linear.1} parent=1 // pred_fallthru
      _
    // Predicated region
    $region26: #{pallas_linear.1} parent=1 // pred_check
      _
    $region27: #{pallas_linear.1} parent=1 // pred_check_branch
      %160 = sbr.rel (0) target = $region29
    $region28: #{pallas_linear.1} parent=1 // pred_region
      _
    $region29: #{pallas_linear.1} parent=1 // pred_fallthru
      _
    %161 = vsyncpa [#allocation3], 1

</llo_original>
